<compile_context>
chip_gen: v7x
topology: tpu7x:2x2x1
jax: 0.10.0
libtpu: 0.0.40
codegen_flags: <defaults>
</compile_context>

<pallas_src>
import functools

import jax
import jax.numpy as jnp
from jax import lax
from jax.experimental import pallas as pl
from jax.experimental.pallas import tpu as pltpu

_LANE = 128


def _round_up(n, m):
    return ((n + m - 1) // m) * m


# ---------------------------------------------------------------------------
# Fused kernel: all layers + sigmoid + MCM constraint for one batch tile
# ---------------------------------------------------------------------------
def _fused_kernel(x_ref, *args, nb_layers: int, act: str, c_real: int,
                  k_chunk: int, max_unrolled_chunks: int = 8):
    """args = (w0, b0, ..., w_{L-1}, b_{L-1}, rT_ref, out_ref, hT_scratch)."""
    ht_sc = args[-1]          # (c_pad, bn) f32 scratch: final activations, transposed
    out_ref = args[-2]        # (bn, c_pad) f32
    rt_ref = args[-3]         # (c_pad, c_pad) f32; row k holds R[:, k]
    layer_refs = args[:-3]

    bn, c_pad = out_ref.shape

    # ---- MLP layers: activations never leave VMEM -------------------------
    h = x_ref[...]
    for i in range(nb_layers):
        w = layer_refs[2 * i][...]          # (din_pad, dout_pad), matmul dtype
        b = layer_refs[2 * i + 1][...]      # (1, dout_pad), f32
        y = jnp.dot(h.astype(w.dtype), w, preferred_element_type=jnp.float32) + b
        if i == nb_layers - 1:
            h = jax.nn.sigmoid(y)           # EUP
        elif act == "tanh":
            h = jnp.tanh(y)
        else:
            h = jnp.maximum(y, 0.0)
        # dropout is identity in eval mode

    # Padded class lanes hold sigmoid(0) = 0.5; zero them so padded k chunks
    # below contribute exactly 0 + 0 to the running max.
    if c_pad > c_real:
        lane = lax.broadcasted_iota(jnp.int32, h.shape, 1)
        h = jnp.where(lane < c_real, h, 0.0)

    # One transpose per tile; all k-chunk accesses are leading-axis slices.
    ht_sc[...] = h.T

    # ---- MCM / Lukasiewicz constraint --------------------------------------
    #   out[n, j] = max_k relu(R[j, k] + h[n, k] - 1)
    #             = relu(max_k (R[j, k] + h[n, k]) - 1)
    n_chunks = -(-c_real // k_chunk)

    def chunk_fold(acc, kb):
        h_blk = ht_sc[pl.ds(kb, k_chunk), :]     # (KC, bn)
        rt_blk = rt_ref[pl.ds(kb, k_chunk), :]   # (KC, c_pad)
        s = h_blk[:, :, None] + rt_blk[:, None, :]       # (KC, bn, c_pad)
        return jnp.maximum(acc, jnp.max(s, axis=0))      # leading-axis max: VPU only

    acc = jnp.zeros((bn, c_pad), jnp.float32)
    if n_chunks <= max_unrolled_chunks:
        for c in range(n_chunks):                # small C: static unroll
            acc = chunk_fold(acc, c * k_chunk)
    else:                                        # large C: bounded live ranges
        def body(c, a):
            kb = pl.multiple_of(c * k_chunk, k_chunk)
            return chunk_fold(a, kb)
        acc = lax.fori_loop(0, n_chunks, body, acc, unroll=4)

    out_ref[...] = jnp.maximum(acc - 1.0, 0.0).astype(out_ref.dtype)


# ---------------------------------------------------------------------------
# One-time parameter padding (hoisted out of the forward path)
# ---------------------------------------------------------------------------
def _pad_params(weights, biases, r, matmul_dtype=jnp.bfloat16):
    w_p, b_p = [], []
    for w, b in zip(weights, biases):
        din, dout = w.shape
        dip, dop = _round_up(din, _LANE), _round_up(dout, _LANE)
        w_p.append(jnp.zeros((dip, dop), matmul_dtype)
                   .at[:din, :dout].set(w.astype(matmul_dtype)))
        b_p.append(jnp.zeros((1, dop), jnp.float32)
                   .at[0, :dout].set(b.astype(jnp.float32)))
    c_real = r.shape[0]
    c_pad = _round_up(c_real, _LANE)
    # R transposed: row k of rt holds R[j, k] for all j, laid out along lanes.
    rt_p = jnp.zeros((c_pad, c_pad), jnp.float32).at[:c_real, :c_real].set(
        jnp.asarray(r, jnp.float32).T)
    return tuple(w_p), tuple(b_p), rt_p


def _const_spec(shape):
    """BlockSpec for grid-invariant operands: single-buffer them (no benefit
    from double-buffering a block whose index never changes)."""
    try:
        return pl.BlockSpec(shape, lambda i: (0, 0), pipeline_mode=pl.Buffered(1))
    except (TypeError, AttributeError):
        return pl.BlockSpec(shape, lambda i: (0, 0))


# ---------------------------------------------------------------------------
# Forward on pre-padded parameters (jitted; only x padding happens per call)
# ---------------------------------------------------------------------------
def chmcnn_forward_padded(x, w_p, b_p, rt_p, *, c_real, non_lin="relu",
                          batch_tile=256, k_chunk=8):
    n, in_dim = x.shape
    nb_layers = len(w_p)
    in_pad = w_p[0].shape[0]
    c_pad = rt_p.shape[0]
    matmul_dtype = w_p[0].dtype
    act = "tanh" if non_lin == "tanh" else "relu"

    # Batch tile: multiple of 16 (bf16 sublane packing), up to `batch_tile`
    # (256 fills the v6e/v7x MXU rows).  If a single tile would swallow the
    # whole batch and the tile is large, split it so the grid has >= 2 steps
    # (keeps v7x's second TensorCore busy via dimension_semantics="parallel").
    bn = min(batch_tile, _round_up(n, 16))
    if _round_up(n, bn) == bn and bn >= 128:
        half = _round_up((n + 1) // 2, 16)
        bn = max(half, 16)
    n_pad = _round_up(n, bn)
    grid = (n_pad // bn,)

    x_p = jnp.zeros((n_pad, in_pad), matmul_dtype).at[:n, :in_dim].set(
        x.astype(matmul_dtype))

    in_specs = [pl.BlockSpec((bn, in_pad), lambda i: (i, 0))]
    inputs = [x_p]
    for w, b in zip(w_p, b_p):
        in_specs += [_const_spec(w.shape), _const_spec(b.shape)]
        inputs += [w, b]
    in_specs.append(_const_spec(rt_p.shape))
    inputs.append(rt_p)

    # Explicit scoped-VMEM budget: actual residency (params single-buffered,
    # x/out double-buffered, h^T scratch, constraint chunk temporaries) with
    # 2x headroom, capped at 64 MiB (v7x physical VMEM per TensorCore).
    itemsize = jnp.dtype(matmul_dtype).itemsize
    param_bytes = sum(int(w.size) * w.dtype.itemsize + int(b.size) * b.dtype.itemsize
                      for w, b in zip(w_p, b_p)) + int(rt_p.size) * rt_p.dtype.itemsize
    work_bytes = (2 * bn * in_pad * itemsize
                  + 2 * bn * c_pad * 4
                  + bn * c_pad * 4
                  + (k_chunk + 2) * bn * c_pad * 4)
    vmem_limit = int(min(max(2 * (param_bytes + work_bytes), 32 * 1024 * 1024),
                         64 * 1024 * 1024))

    out = pl.pallas_call(
        functools.partial(_fused_kernel, nb_layers=nb_layers, act=act,
                          c_real=c_real, k_chunk=k_chunk),
        out_shape=jax.ShapeDtypeStruct((n_pad, c_pad), jnp.float32),
        grid=grid,
        in_specs=in_specs,
        out_specs=pl.BlockSpec((bn, c_pad), lambda i: (i, 0)),
        scratch_shapes=[pltpu.VMEM((c_pad, bn), jnp.float32)],
        compiler_params=pltpu.CompilerParams(
            dimension_semantics=("parallel",),
            vmem_limit_bytes=vmem_limit),
    )(*inputs)

    return out[:n, :c_real]


# ---------------------------------------------------------------------------
# Model
# ---------------------------------------------------------------------------
class ConstrainedFFNNModelPallas:
    """Inference-mode (eval) replica of ConstrainedFFNNModel.forward."""

    def __init__(self, input_dim, hidden_dim, output_dim, hyperparams, R, key):
        self.nb_layers = hyperparams["num_layers"]
        self.non_lin = hyperparams["non_lin"]  # 'tanh' or anything-else -> relu
        self.R = jnp.asarray(R, jnp.float32)
        dims = []
        for i in range(self.nb_layers):
            if i == 0:
                dims.append((input_dim, hidden_dim))
            elif i == self.nb_layers - 1:
                dims.append((hidden_dim, output_dim))
            else:
                dims.append((hidden_dim, hidden_dim))
        self.weights, self.biases = [], []
        for din, dout in dims:
            key, kw, kb = jax.random.split(key, 3)
            bound = 1.0 / float(din) ** 0.5  # PyTorch default Linear init range
            self.weights.append(
                jax.random.uniform(kw, (din, dout), jnp.float32, -bound, bound))
            self.biases.append(
                jax.random.uniform(kb, (dout,), jnp.float32, -bound, bound))

        # Pad / cast parameters ONCE (not per forward call).
        self._w_p, self._b_p, self._rt_p = _pad_params(
            self.weights, self.biases, self.R, jnp.bfloat16)
        self._fwd = jax.jit(functools.partial(
            chmcnn_forward_padded, c_real=output_dim, non_lin=self.non_lin))

    def __call__(self, x):
        return self._fwd(x, self._w_p, self._b_p, self._rt_p)


# ---------------------------------------------------------------------------
# Pure-JAX reference (mirrors the PyTorch forward in eval mode, f32 math)
# ---------------------------------------------------------------------------
def _reference_forward(x, weights, biases, R, non_lin):
    h = x
    L = len(weights)
    for i, (w, b) in enumerate(zip(weights, biases)):
        y = h @ w + b
        if i == L - 1:
            h = jax.nn.sigmoid(y)
        elif non_lin == "tanh":
            h = jnp.tanh(y)
        else:
            h = jnp.maximum(y, 0.0)
    c = h[:, None, :]                                     # (N, 1, C)
    out = jnp.max(jnp.maximum(R[None, :, :] + c - 1.0, 0.0), axis=2)
    return out


# ---------------------------------------------------------------------------
# Main
# ---------------------------------------------------------------------------
if __name__ == "__main__":
    key = jax.random.PRNGKey(0)

    batch = 8
    input_dim = 32
    hidden_dim = 64
    output_dim = 16
    hyperparams = {"num_layers": 3, "dropout": 0.7, "non_lin": "relu"}

    # Deterministic hierarchy matrix R (C x C): identity + toy ancestor edges.
    R = jnp.eye(output_dim, dtype=jnp.float32)
    rows = jnp.arange(output_dim)
    R = R.at[rows, rows // 2].set(1.0)

    key, kx, kparams = jax.random.split(key, 3)
    x = jax.random.normal(kx, (batch, input_dim), dtype=jnp.float32)

    model = ConstrainedFFNNModelPallas(
        input_dim, hidden_dim, output_dim, hyperparams, R, kparams
    )

    out = model(x)
    out = jax.block_until_ready(out)

    assert out.shape == (batch, output_dim)
    assert bool(jnp.all(jnp.isfinite(out)))
    # Post-sigmoid + constraint output must lie in [0, 1].
    assert bool(jnp.all(out >= 0.0)) and bool(jnp.all(out <= 1.0))

    # Validate against the f32 reference (bf16 MXU path -> small tolerance).
    ref = _reference_forward(x, model.weights, model.biases, model.R,
                             model.non_lin)
    err = float(jnp.max(jnp.abs(out - ref)))
    assert err < 2e-2, f"max abs error vs reference: {err}"

    print("KERNEL_OK")
</pallas_src>

<mosaic_0001>
module attributes {stable_mosaic.version = 11 : i64} {
  func.func @_fused_kernel(%arg0: i32, %arg1: memref<16x128xbf16, #tpu.memory_space<vmem>>, %arg2: memref<128x128xbf16, #tpu.memory_space<vmem>>, %arg3: memref<1x128xf32, #tpu.memory_space<vmem>>, %arg4: memref<128x128xbf16, #tpu.memory_space<vmem>>, %arg5: memref<1x128xf32, #tpu.memory_space<vmem>>, %arg6: memref<128x128xbf16, #tpu.memory_space<vmem>>, %arg7: memref<1x128xf32, #tpu.memory_space<vmem>>, %arg8: memref<128x128xf32, #tpu.memory_space<vmem>>, %arg9: memref<16x128xf32, #tpu.memory_space<vmem>>, %arg10: memref<128x16xf32, #tpu.memory_space<vmem>>) attributes {dimension_semantics = [#tpu.dimension_semantics<parallel>], iteration_bounds = array<i64: 1>, scalar_prefetch = 0 : i64, scratch_operands = 1 : i64, tpu.core_type = #tpu.core_type<tc>, window_params = [{transform_indices = @transform_0, window_bounds = array<i64: 16, 128>}, {pipeline_mode = #tpu.pipeline_mode<synchronous>, transform_indices = @transform_1, window_bounds = array<i64: 128, 128>}, {pipeline_mode = #tpu.pipeline_mode<synchronous>, transform_indices = @transform_2, window_bounds = array<i64: 1, 128>}, {pipeline_mode = #tpu.pipeline_mode<synchronous>, transform_indices = @transform_3, window_bounds = array<i64: 128, 128>}, {pipeline_mode = #tpu.pipeline_mode<synchronous>, transform_indices = @transform_4, window_bounds = array<i64: 1, 128>}, {pipeline_mode = #tpu.pipeline_mode<synchronous>, transform_indices = @transform_5, window_bounds = array<i64: 128, 128>}, {pipeline_mode = #tpu.pipeline_mode<synchronous>, transform_indices = @transform_6, window_bounds = array<i64: 1, 128>}, {pipeline_mode = #tpu.pipeline_mode<synchronous>, transform_indices = @transform_7, window_bounds = array<i64: 128, 128>}, {transform_indices = @transform_8, window_bounds = array<i64: 16, 128>}]} {
    %c0 = arith.constant 0 : index
    %c0_0 = arith.constant 0 : index
    %0 = vector.load %arg1[%c0, %c0_0] : memref<16x128xbf16, #tpu.memory_space<vmem>>, vector<16x128xbf16>
    %c0_1 = arith.constant 0 : index
    %c0_2 = arith.constant 0 : index
    %1 = vector.load %arg2[%c0_1, %c0_2] : memref<128x128xbf16, #tpu.memory_space<vmem>>, vector<128x128xbf16>
    %c0_3 = arith.constant 0 : index
    %c0_4 = arith.constant 0 : index
    %2 = vector.load %arg3[%c0_3, %c0_4] : memref<1x128xf32, #tpu.memory_space<vmem>>, vector<1x128xf32>
    %cst = arith.constant dense<0.000000e+00> : vector<16x128xf32>
    %3 = tpu.matmul %0, %1, %cst {dimension_numbers = #tpu.dot_dimension_numbers<[1], [0], [0], [1], [0, 0, 1, 1], [], []>} : vector<16x128xbf16>, vector<128x128xbf16>, vector<16x128xf32> -> vector<16x128xf32>
    %4 = vector.broadcast %2 : vector<1x128xf32> to vector<16x128xf32>
    %5 = arith.addf %3, %4 : vector<16x128xf32>
    %cst_5 = arith.constant 0.000000e+00 : f32
    %6 = vector.broadcast %cst_5 : f32 to vector<16x128xf32>
    %7 = arith.maximumf %5, %6 : vector<16x128xf32>
    %c0_6 = arith.constant 0 : index
    %c0_7 = arith.constant 0 : index
    %8 = vector.load %arg4[%c0_6, %c0_7] : memref<128x128xbf16, #tpu.memory_space<vmem>>, vector<128x128xbf16>
    %c0_8 = arith.constant 0 : index
    %c0_9 = arith.constant 0 : index
    %9 = vector.load %arg5[%c0_8, %c0_9] : memref<1x128xf32, #tpu.memory_space<vmem>>, vector<1x128xf32>
    %10 = arith.truncf %7 : vector<16x128xf32> to vector<16x128xbf16>
    %cst_10 = arith.constant dense<0.000000e+00> : vector<16x128xf32>
    %11 = tpu.matmul %10, %8, %cst_10 {dimension_numbers = #tpu.dot_dimension_numbers<[1], [0], [0], [1], [0, 0, 1, 1], [], []>} : vector<16x128xbf16>, vector<128x128xbf16>, vector<16x128xf32> -> vector<16x128xf32>
    %12 = vector.broadcast %9 : vector<1x128xf32> to vector<16x128xf32>
    %13 = arith.addf %11, %12 : vector<16x128xf32>
    %cst_11 = arith.constant 0.000000e+00 : f32
    %14 = vector.broadcast %cst_11 : f32 to vector<16x128xf32>
    %15 = arith.maximumf %13, %14 : vector<16x128xf32>
    %c0_12 = arith.constant 0 : index
    %c0_13 = arith.constant 0 : index
    %16 = vector.load %arg6[%c0_12, %c0_13] : memref<128x128xbf16, #tpu.memory_space<vmem>>, vector<128x128xbf16>
    %c0_14 = arith.constant 0 : index
    %c0_15 = arith.constant 0 : index
    %17 = vector.load %arg7[%c0_14, %c0_15] : memref<1x128xf32, #tpu.memory_space<vmem>>, vector<1x128xf32>
    %18 = arith.truncf %15 : vector<16x128xf32> to vector<16x128xbf16>
    %cst_16 = arith.constant dense<0.000000e+00> : vector<16x128xf32>
    %19 = tpu.matmul %18, %16, %cst_16 {dimension_numbers = #tpu.dot_dimension_numbers<[1], [0], [0], [1], [0, 0, 1, 1], [], []>} : vector<16x128xbf16>, vector<128x128xbf16>, vector<16x128xf32> -> vector<16x128xf32>
    %20 = vector.broadcast %17 : vector<1x128xf32> to vector<16x128xf32>
    %21 = arith.addf %19, %20 : vector<16x128xf32>
    %22 = arith.negf %21 : vector<16x128xf32>
    %23 = math.exp %22 : vector<16x128xf32>
    %cst_17 = arith.constant 1.000000e+00 : f32
    %24 = vector.broadcast %cst_17 : f32 to vector<16x128xf32>
    %25 = arith.addf %24, %23 : vector<16x128xf32>
    %26 = arith.divf %24, %25 : vector<16x128xf32>
    %27 = tpu.iota {dimensions = array<i32: 1>} : vector<16x128xi32>
    %c16_i32 = arith.constant 16 : i32
    %28 = vector.broadcast %c16_i32 : i32 to vector<16x128xi32>
    %29 = arith.cmpi slt, %27, %28 : vector<16x128xi32>
    %cst_18 = arith.constant 0.000000e+00 : f32
    %30 = vector.broadcast %cst_18 : f32 to vector<16x128xf32>
    %31 = arith.select %29, %26, %30 : vector<16x128xi1>, vector<16x128xf32>
    %32 = tpu.transpose %31, [1, 0] : vector<16x128xf32> -> vector<128x16xf32>
    %c0_19 = arith.constant 0 : index
    %c0_20 = arith.constant 0 : index
    %33 = vector.load %arg10[%c0_19, %c0_20] : memref<128x16xf32, #tpu.memory_space<vmem>>, vector<128x16xf32>
    tpu.vector_store %arg10[%c0_19, %c0_20], %32 {strides = array<i32>} : memref<128x16xf32, #tpu.memory_space<vmem>>, vector<128x16xf32>,
    %cst_21 = arith.constant 0.000000e+00 : f32
    %34 = vector.broadcast %cst_21 : f32 to vector<16x128xf32>
    %c0_22 = arith.constant 0 : index
    %c0_23 = arith.constant 0 : index
    %35 = vector.load %arg10[%c0_22, %c0_23] : memref<128x16xf32, #tpu.memory_space<vmem>>, vector<8x16xf32>
    %c0_24 = arith.constant 0 : index
    %c0_25 = arith.constant 0 : index
    %36 = vector.load %arg8[%c0_24, %c0_25] : memref<128x128xf32, #tpu.memory_space<vmem>>, vector<8x128xf32>
    %37 = vector.shape_cast %35 : vector<8x16xf32> to vector<8x16x1xf32>
    %38 = vector.shape_cast %36 : vector<8x128xf32> to vector<8x1x128xf32>
    %39 = vector.broadcast %37 : vector<8x16x1xf32> to vector<8x16x128xf32>
    %40 = vector.broadcast %38 : vector<8x1x128xf32> to vector<8x16x128xf32>
    %41 = arith.addf %39, %40 : vector<8x16x128xf32>
    %cst_26 = arith.constant dense<0xFF800000> : vector<16x128xf32>
    %42 = vector.multi_reduction <maximumf>, %41, %cst_26 [0] : vector<8x16x128xf32> to vector<16x128xf32>
    %43 = arith.maximumf %34, %42 : vector<16x128xf32>
    %c8 = arith.constant 8 : index
    %c0_27 = arith.constant 0 : index
    %44 = vector.load %arg10[%c8, %c0_27] : memref<128x16xf32, #tpu.memory_space<vmem>>, vector<8x16xf32>
    %c8_28 = arith.constant 8 : index
    %c0_29 = arith.constant 0 : index
    %45 = vector.load %arg8[%c8_28, %c0_29] : memref<128x128xf32, #tpu.memory_space<vmem>>, vector<8x128xf32>
    %46 = vector.shape_cast %44 : vector<8x16xf32> to vector<8x16x1xf32>
    %47 = vector.shape_cast %45 : vector<8x128xf32> to vector<8x1x128xf32>
    %48 = vector.broadcast %46 : vector<8x16x1xf32> to vector<8x16x128xf32>
    %49 = vector.broadcast %47 : vector<8x1x128xf32> to vector<8x16x128xf32>
    %50 = arith.addf %48, %49 : vector<8x16x128xf32>
    %cst_30 = arith.constant dense<0xFF800000> : vector<16x128xf32>
    %51 = vector.multi_reduction <maximumf>, %50, %cst_30 [0] : vector<8x16x128xf32> to vector<16x128xf32>
    %52 = arith.maximumf %43, %51 : vector<16x128xf32>
    %cst_31 = arith.constant 1.000000e+00 : f32
    %53 = vector.broadcast %cst_31 : f32 to vector<16x128xf32>
    %54 = arith.subf %52, %53 : vector<16x128xf32>
    %cst_32 = arith.constant 0.000000e+00 : f32
    %55 = vector.broadcast %cst_32 : f32 to vector<16x128xf32>
    %56 = arith.maximumf %54, %55 : vector<16x128xf32>
    %c0_33 = arith.constant 0 : index
    %c0_34 = arith.constant 0 : index
    %57 = vector.load %arg9[%c0_33, %c0_34] : memref<16x128xf32, #tpu.memory_space<vmem>>, vector<16x128xf32>
    tpu.vector_store %arg9[%c0_33, %c0_34], %56 {strides = array<i32>} : memref<16x128xf32, #tpu.memory_space<vmem>>, vector<16x128xf32>,
    return
  }
  func.func @transform_0(%arg0: i32) -> (i32, i32) {
    %c0_i32 = arith.constant 0 : i32
    %c0_i32_0 = arith.constant 0 : i32
    return %arg0, %c0_i32 : i32, i32
  }
  func.func @transform_1(%arg0: i32) -> (i32, i32) {
    %c0_i32 = arith.constant 0 : i32
    %c0_i32_0 = arith.constant 0 : i32
    %c0_i32_1 = arith.constant 0 : i32
    return %c0_i32, %c0_i32_0 : i32, i32
  }
  func.func @transform_2(%arg0: i32) -> (i32, i32) {
    %c0_i32 = arith.constant 0 : i32
    %c0_i32_0 = arith.constant 0 : i32
    %c0_i32_1 = arith.constant 0 : i32
    return %c0_i32, %c0_i32_0 : i32, i32
  }
  func.func @transform_3(%arg0: i32) -> (i32, i32) {
    %c0_i32 = arith.constant 0 : i32
    %c0_i32_0 = arith.constant 0 : i32
    %c0_i32_1 = arith.constant 0 : i32
    return %c0_i32, %c0_i32_0 : i32, i32
  }
  func.func @transform_4(%arg0: i32) -> (i32, i32) {
    %c0_i32 = arith.constant 0 : i32
    %c0_i32_0 = arith.constant 0 : i32
    %c0_i32_1 = arith.constant 0 : i32
    return %c0_i32, %c0_i32_0 : i32, i32
  }
  func.func @transform_5(%arg0: i32) -> (i32, i32) {
    %c0_i32 = arith.constant 0 : i32
    %c0_i32_0 = arith.constant 0 : i32
    %c0_i32_1 = arith.constant 0 : i32
    return %c0_i32, %c0_i32_0 : i32, i32
  }
  func.func @transform_6(%arg0: i32) -> (i32, i32) {
    %c0_i32 = arith.constant 0 : i32
    %c0_i32_0 = arith.constant 0 : i32
    %c0_i32_1 = arith.constant 0 : i32
    return %c0_i32, %c0_i32_0 : i32, i32
  }
  func.func @transform_7(%arg0: i32) -> (i32, i32) {
    %c0_i32 = arith.constant 0 : i32
    %c0_i32_0 = arith.constant 0 : i32
    %c0_i32_1 = arith.constant 0 : i32
    return %c0_i32, %c0_i32_0 : i32, i32
  }
  func.func @transform_8(%arg0: i32) -> (i32, i32) {
    %c0_i32 = arith.constant 0 : i32
    %c0_i32_0 = arith.constant 0 : i32
    return %arg0, %c0_i32 : i32, i32
  }
}

</mosaic_0001>

<llo_original>
// kernel: chmcnn_forward_padded.1
$region0: #{chmcnn_forward_padded.1}
  #allocation0 [shape = 'u32[]', space=smem, size = 0x4, offset = 0x4, fixed_abs, tag = 'smem constant byte address 0x4 - core index']
  #allocation1 [shape = 'u32[144,128]{1,0:T(1,128)}', space=vmem, size = 0x12000, scoped, tag = 'internal scratch']
  #allocation2 [shape = 'f32[128,16]{1,0:T(8,128)}', space=vmem, size = 0x10000, scoped, tag = 'scratch operand']
  %s0 = inlined_call_operand.vmem [shape: bf16[16,128], index: 0, kind: input, shape index: {}]
  %s1 = inlined_call_operand.hbm [shape: bf16[128,128], index: 1, kind: input, shape index: {}]
  %s2 = inlined_call_operand.vmem [shape: f32[1,128], index: 2, kind: input, shape index: {}]
  %s3 = inlined_call_operand.hbm [shape: bf16[128,128], index: 3, kind: input, shape index: {}]
  %s4 = inlined_call_operand.vmem [shape: f32[1,128], index: 4, kind: input, shape index: {}]
  %s5 = inlined_call_operand.hbm [shape: bf16[128,128], index: 5, kind: input, shape index: {}]
  %s6 = inlined_call_operand.vmem [shape: f32[1,128], index: 6, kind: input, shape index: {}]
  %s7 = inlined_call_operand.hbm [shape: f32[128,128], index: 7, kind: input, shape index: {}]
  %s8 = inlined_call_operand.vmem [shape: f32[16,128], index: 8, kind: output, shape index: {}]
  %s9 = sld [smem:[#allocation0]]
  $region58: #{chmcnn_forward_padded.1} parent=0
    _
  %s11 = ssub.s32 1, %s9
  %s12 = scalar_select 0, %s11, %s9
  $region1: #{chmcnn_forward_padded.1} parent=0
    #allocation3 [shape = 'u8[32768]{0}', space=vmem, size = 0x8000, scoped, tag = 'input window, operand 1, single buffered']
    #allocation4 [shape = 's32[1]{0}', space=sflag, size = 0x4, scoped, tag = 'scoped memory for chmcnn_forward_padded.1']
    #allocation5 [shape = 'u8[32768]{0}', space=vmem, size = 0x8000, scoped, tag = 'input window, operand 3, single buffered']
    #allocation6 [shape = 's32[1]{0}', space=sflag, size = 0x4, scoped, tag = 'scoped memory for chmcnn_forward_padded.1']
    #allocation7 [shape = 'u8[32768]{0}', space=vmem, size = 0x8000, scoped, tag = 'input window, operand 5, single buffered']
    #allocation8 [shape = 'u8[65536]{0}', space=vmem, size = 0x10000, scoped, tag = 'input window, operand 7, single buffered']
    #allocation9 [shape = 's32[1]{0}', space=sflag, size = 0x4, scoped, tag = 'scoped memory for chmcnn_forward_padded.1']
    %13 = vsyncpa [#allocation4], 0
    %14 = vsyncpa [#allocation6], 0
    %15 = vsyncpa [#allocation9], 0
    // Predicated region
    $region2: #{chmcnn_forward_padded.1} parent=1 // pred_check
      _
    $region3: #{chmcnn_forward_padded.1} parent=1 // pred_check_branch
      %17 = sbr.rel (0) target = $region5
    $region4: #{chmcnn_forward_padded.1} parent=1 // pred_region
      _
    $region5: #{chmcnn_forward_padded.1} parent=1 // pred_fallthru
      _
    // Predicated region
    $region6: #{chmcnn_forward_padded.1} parent=1 // pred_check
      _
    $region7: #{chmcnn_forward_padded.1} parent=1 // pred_check_branch
      %19 = sbr.rel (0) target = $region9
    $region8: #{chmcnn_forward_padded.1} parent=1 // pred_region
      %s21 = ssub.s32 1024, 1024
      %22 = vsyncadd [#allocation4], %s21
      %s23 = sshll.u32 [#allocation3], 4
      %s24 = int_to_ptr.vmem [resolvable:$true] %s23
      %29 = dma.hbm_to_vmem [thread:$0]  %s1, 1024, %s24, [#allocation4], 64, 64, 4
    $region9: #{chmcnn_forward_padded.1} parent=1 // pred_fallthru
      _
    // Predicated region
    $region10: #{chmcnn_forward_padded.1} parent=1 // pred_check
      _
    $region11: #{chmcnn_forward_padded.1} parent=1 // pred_check_branch
      %31 = sbr.rel (0) target = $region13
    $region12: #{chmcnn_forward_padded.1} parent=1 // pred_region
      _
    $region13: #{chmcnn_forward_padded.1} parent=1 // pred_fallthru
      _
    // Predicated region
    $region14: #{chmcnn_forward_padded.1} parent=1 // pred_check
      _
    $region15: #{chmcnn_forward_padded.1} parent=1 // pred_check_branch
      %33 = sbr.rel (0) target = $region17
    $region16: #{chmcnn_forward_padded.1} parent=1 // pred_region
      %s35 = ssub.s32 1024, 1024
      %36 = vsyncadd [#allocation6], %s35
      %s37 = sshll.u32 [#allocation5], 4
      %s38 = int_to_ptr.vmem [resolvable:$true] %s37
      %43 = dma.hbm_to_vmem [thread:$0]  %s3, 1024, %s38, [#allocation6], 64, 64, 4
    $region17: #{chmcnn_forward_padded.1} parent=1 // pred_fallthru
      _
    // Predicated region
    $region18: #{chmcnn_forward_padded.1} parent=1 // pred_check
      _
    $region19: #{chmcnn_forward_padded.1} parent=1 // pred_check_branch
      %45 = sbr.rel (0) target = $region21
    $region20: #{chmcnn_forward_padded.1} parent=1 // pred_region
      _
    $region21: #{chmcnn_forward_padded.1} parent=1 // pred_fallthru
      _
    // Predicated region
    $region22: #{chmcnn_forward_padded.1} parent=1 // pred_check
      _
    $region23: #{chmcnn_forward_padded.1} parent=1 // pred_check_branch
      %47 = sbr.rel (0) target = $region25
    $region24: #{chmcnn_forward_padded.1} parent=1 // pred_region
      %s49 = ssub.s32 1024, 1024
      %50 = vsyncadd [#allocation6], %s49
      %s51 = sshll.u32 [#allocation7], 4
      %s52 = int_to_ptr.vmem [resolvable:$true] %s51
      %57 = dma.hbm_to_vmem [thread:$0]  %s5, 1024, %s52, [#allocation6], 64, 64, 4
    $region25: #{chmcnn_forward_padded.1} parent=1 // pred_fallthru
      _
    // Predicated region
    $region26: #{chmcnn_forward_padded.1} parent=1 // pred_check
      _
    $region27: #{chmcnn_forward_padded.1} parent=1 // pred_check_branch
      %59 = sbr.rel (0) target = $region29
    $region28: #{chmcnn_forward_padded.1} parent=1 // pred_region
      _
    $region29: #{chmcnn_forward_padded.1} parent=1 // pred_fallthru
      _
    // Predicated region
    $region30: #{chmcnn_forward_padded.1} parent=1 // pred_check
      _
    $region31: #{chmcnn_forward_padded.1} parent=1 // pred_check_branch
      %61 = sbr.rel (0) target = $region33
    $region32: #{chmcnn_forward_padded.1} parent=1 // pred_region
      %s63 = ssub.s32 2048, 2048
      %64 = vsyncadd [#allocation9], %s63
      %s65 = sshll.u32 [#allocation8], 4
      %s66 = int_to_ptr.vmem [resolvable:$true] %s65
      %71 = dma.hbm_to_vmem [thread:$0]  %s7, 2048, %s66, [#allocation9], 128, 128, 8
    $region33: #{chmcnn_forward_padded.1} parent=1 // pred_fallthru
      _
    // Predicated region
    $region34: #{chmcnn_forward_padded.1} parent=1 // pred_check
      _
    $region35: #{chmcnn_forward_padded.1} parent=1 // pred_check_branch
      %73 = sbr.rel (0) target = $region37
    $region36: #{chmcnn_forward_padded.1} parent=1 // pred_region
      %74 = dma.done [#allocation4], 1024
    $region37: #{chmcnn_forward_padded.1} parent=1 // pred_fallthru
      _
    // Predicated region
    $region38: #{chmcnn_forward_padded.1} parent=1 // pred_check
      _
    $region39: #{chmcnn_forward_padded.1} parent=1 // pred_check_branch
      %76 = sbr.rel (0) target = $region41
    $region40: #{chmcnn_forward_padded.1} parent=1 // pred_region
      %77 = dma.done [#allocation6], 1024
    $region41: #{chmcnn_forward_padded.1} parent=1 // pred_fallthru
      _
    // Predicated region
    $region42: #{chmcnn_forward_padded.1} parent=1 // pred_check
      _
    $region43: #{chmcnn_forward_padded.1} parent=1 // pred_check_branch
      %79 = sbr.rel (0) target = $region45
    $region44: #{chmcnn_forward_padded.1} parent=1 // pred_region
      %80 = dma.done [#allocation6], 1024
    $region45: #{chmcnn_forward_padded.1} parent=1 // pred_fallthru
      _
    // Predicated region
    $region46: #{chmcnn_forward_padded.1} parent=1 // pred_check
      _
    $region47: #{chmcnn_forward_padded.1} parent=1 // pred_check_branch
      %82 = sbr.rel (0) target = $region49
    $region48: #{chmcnn_forward_padded.1} parent=1 // pred_region
      %83 = dma.done [#allocation9], 2048
    $region49: #{chmcnn_forward_padded.1} parent=1 // pred_fallthru
      _
    %v85 = vld [vmem:[%s0] sm:$0xf]
    %v86 = vld [vmem:[%s0 + $0x4] sm:$0xf]
    %v87 = vld [vmem:[#allocation3] sm:$0xf]
    %v88 = vld [vmem:[#allocation3 + $0x4] sm:$0xf]
    %v89 = vld [vmem:[#allocation3 + $0x8] sm:$0xf]
    %v90 = vld [vmem:[#allocation3 + $0xc] sm:$0xf]
    %v91 = vld [vmem:[#allocation3 + $0x10] sm:$0xf]
    %v92 = vld [vmem:[#allocation3 + $0x14] sm:$0xf]
    %v93 = vld [vmem:[#allocation3 + $0x18] sm:$0xf]
    %v94 = vld [vmem:[#allocation3 + $0x1c] sm:$0xf]
    %v95 = vld [vmem:[#allocation3 + $0x20] sm:$0xf]
    %v96 = vld [vmem:[#allocation3 + $0x24] sm:$0xf]
    %v97 = vld [vmem:[#allocation3 + $0x28] sm:$0xf]
    %v98 = vld [vmem:[#allocation3 + $0x2c] sm:$0xf]
    %v99 = vld [vmem:[#allocation3 + $0x30] sm:$0xf]
    %v100 = vld [vmem:[#allocation3 + $0x34] sm:$0xf]
    %v101 = vld [vmem:[#allocation3 + $0x38] sm:$0xf]
    %v102 = vld [vmem:[#allocation3 + $0x3c] sm:$0xf]
    %v103 = vld [vmem:[%s2] sm:$0x1]
    %v105 = vlaneseq
    %v106 = vshrl.u32 %v105, 7
    %v107 = vsub.s32 0, %v106
    %v108 = vrot.slane %v103, %v107
    %v112 = vunpack.c.l.b16 %v85
    %v113 = vunpack.c.l.b16 %v86
    %v114 = vpack.c.b16 %v113, %v112
    %v132 = vunpack.c.l.b16 %v87
    %v133 = vunpack.c.l.b16 %v88
    %v134 = vunpack.c.l.b16 %v89
    %v135 = vunpack.c.l.b16 %v90
    %v136 = vunpack.c.l.b16 %v91
    %v137 = vunpack.c.l.b16 %v92
    %v138 = vunpack.c.l.b16 %v93
    %v139 = vunpack.c.l.b16 %v94
    %v140 = vunpack.c.l.b16 %v95
    %v141 = vunpack.c.l.b16 %v96
    %v142 = vunpack.c.l.b16 %v97
    %v143 = vunpack.c.l.b16 %v98
    %v144 = vunpack.c.l.b16 %v99
    %v145 = vunpack.c.l.b16 %v100
    %v146 = vunpack.c.l.b16 %v101
    %v147 = vunpack.c.l.b16 %v102
    %v148 = vpack.c.b16 %v133, %v132
    %v149 = vpack.c.b16 %v135, %v134
    %v150 = vpack.c.b16 %v137, %v136
    %v151 = vpack.c.b16 %v139, %v138
    %v152 = vpack.c.b16 %v141, %v140
    %v153 = vpack.c.b16 %v143, %v142
    %v154 = vpack.c.b16 %v145, %v144
    %v155 = vpack.c.b16 %v147, %v146
    %164 = vmatprep.subr.bf16.mxu0 0
    %165 = vmatpush1.bf16.msra.mxu0 %v148
    %166 = vmatprep.subr.bf16.mxu0 0
    %167 = vmatpush1.bf16.msra.mxu0 %v149
    %168 = vmatprep.subr.bf16.mxu0 0
    %169 = vmatpush1.bf16.msra.mxu0 %v150
    %170 = vmatprep.subr.bf16.mxu0 0
    %171 = vmatpush1.bf16.msra.mxu0 %v151
    %172 = vmatprep.subr.bf16.mxu0 0
    %173 = vmatpush1.bf16.msra.mxu0 %v152
    %174 = vmatprep.subr.bf16.mxu0 0
    %175 = vmatpush1.bf16.msra.mxu0 %v153
    %176 = vmatprep.subr.bf16.mxu0 0
    %177 = vmatpush1.bf16.msra.mxu0 %v154
    %178 = vmatprep.subr.bf16.mxu0 0
    %179 = vmatpush1.bf16.msra.mxu0 %v155
    %180 = vmatprep.subr.bf16.mxu0 0
    %181 = vmatpush1.bf16.msra.mxu0 0
    %182 = vmatprep.subr.bf16.mxu0 0
    %183 = vmatpush1.bf16.msra.mxu0 0
    %184 = vmatprep.subr.bf16.mxu0 0
    %185 = vmatpush1.bf16.msra.mxu0 0
    %186 = vmatprep.subr.bf16.mxu0 0
    %187 = vmatpush1.bf16.msra.mxu0 0
    %188 = vmatprep.subr.bf16.mxu0 0
    %189 = vmatpush1.bf16.msra.mxu0 0
    %190 = vmatprep.subr.bf16.mxu0 0
    %191 = vmatpush1.bf16.msra.mxu0 0
    %192 = vmatprep.subr.bf16.mxu0 0
    %193 = vmatpush1.bf16.msra.mxu0 0
    %194 = vmatprep.subr.bf16.mxu0 0
    %195 = vmatpush1.bf16.msra.mxu0 0
    %196 = vmatprep.mubr.bf16.mxu0 0
    %197 = vmatmul.mubr.bf16.gmra.mrb[0].mxu0 %v114
    %v198 = vpop.f32.mrb[0].mxu0
    %v199 = vadd.f32 %v108, %v198
    %v200 = vpop.f32.mrb[0].mxu0
    %v201 = vpop.f32.mrb[0].mxu0
    %v202 = vadd.f32 %v108, %v201
    %v203 = vpop.f32.mrb[0].mxu0
    %204 = vdwg.mxu0
    %v205 = vmax.f32 %v199, 0.0
    %v206 = vmax.f32 %v202, 0.0
    %v207 = vld [vmem:[#allocation5] sm:$0xf]
    %v208 = vld [vmem:[#allocation5 + $0x4] sm:$0xf]
    %v209 = vld [vmem:[#allocation5 + $0x8] sm:$0xf]
    %v210 = vld [vmem:[#allocation5 + $0xc] sm:$0xf]
    %v211 = vld [vmem:[#allocation5 + $0x10] sm:$0xf]
    %v212 = vld [vmem:[#allocation5 + $0x14] sm:$0xf]
    %v213 = vld [vmem:[#allocation5 + $0x18] sm:$0xf]
    %v214 = vld [vmem:[#allocation5 + $0x1c] sm:$0xf]
    %v215 = vld [vmem:[#allocation5 + $0x20] sm:$0xf]
    %v216 = vld [vmem:[#allocation5 + $0x24] sm:$0xf]
    %v217 = vld [vmem:[#allocation5 + $0x28] sm:$0xf]
    %v218 = vld [vmem:[#allocation5 + $0x2c] sm:$0xf]
    %v219 = vld [vmem:[#allocation5 + $0x30] sm:$0xf]
    %v220 = vld [vmem:[#allocation5 + $0x34] sm:$0xf]
    %v221 = vld [vmem:[#allocation5 + $0x38] sm:$0xf]
    %v222 = vld [vmem:[#allocation5 + $0x3c] sm:$0xf]
    %v223 = vld [vmem:[%s4] sm:$0x1]
    %v224 = vpack.c.bf16 %v206, %v205
    %v226 = vlaneseq
    %v227 = vshrl.u32 %v226, 7
    %v228 = vsub.s32 0, %v227
    %v229 = vrot.slane %v223, %v228
    %v247 = vunpack.c.l.b16 %v207
    %v248 = vunpack.c.l.b16 %v208
    %v249 = vunpack.c.l.b16 %v209
    %v250 = vunpack.c.l.b16 %v210
    %v251 = vunpack.c.l.b16 %v211
    %v252 = vunpack.c.l.b16 %v212
    %v253 = vunpack.c.l.b16 %v213
    %v254 = vunpack.c.l.b16 %v214
    %v255 = vunpack.c.l.b16 %v215
    %v256 = vunpack.c.l.b16 %v216
    %v257 = vunpack.c.l.b16 %v217
    %v258 = vunpack.c.l.b16 %v218
    %v259 = vunpack.c.l.b16 %v219
    %v260 = vunpack.c.l.b16 %v220
    %v261 = vunpack.c.l.b16 %v221
    %v262 = vunpack.c.l.b16 %v222
    %v263 = vpack.c.b16 %v248, %v247
    %v264 = vpack.c.b16 %v250, %v249
    %v265 = vpack.c.b16 %v252, %v251
    %v266 = vpack.c.b16 %v254, %v253
    %v267 = vpack.c.b16 %v256, %v255
    %v268 = vpack.c.b16 %v258, %v257
    %v269 = vpack.c.b16 %v260, %v259
    %v270 = vpack.c.b16 %v262, %v261
    %279 = vmatprep.subr.bf16.mxu0 0
    %280 = vmatpush1.bf16.msra.mxu0 %v263
    %281 = vmatprep.subr.bf16.mxu0 0
    %282 = vmatpush1.bf16.msra.mxu0 %v264
    %283 = vmatprep.subr.bf16.mxu0 0
    %284 = vmatpush1.bf16.msra.mxu0 %v265
    %285 = vmatprep.subr.bf16.mxu0 0
    %286 = vmatpush1.bf16.msra.mxu0 %v266
    %287 = vmatprep.subr.bf16.mxu0 0
    %288 = vmatpush1.bf16.msra.mxu0 %v267
    %289 = vmatprep.subr.bf16.mxu0 0
    %290 = vmatpush1.bf16.msra.mxu0 %v268
    %291 = vmatprep.subr.bf16.mxu0 0
    %292 = vmatpush1.bf16.msra.mxu0 %v269
    %293 = vmatprep.subr.bf16.mxu0 0
    %294 = vmatpush1.bf16.msra.mxu0 %v270
    %295 = vmatprep.subr.bf16.mxu0 0
    %296 = vmatpush1.bf16.msra.mxu0 0
    %297 = vmatprep.subr.bf16.mxu0 0
    %298 = vmatpush1.bf16.msra.mxu0 0
    %299 = vmatprep.subr.bf16.mxu0 0
    %300 = vmatpush1.bf16.msra.mxu0 0
    %301 = vmatprep.subr.bf16.mxu0 0
    %302 = vmatpush1.bf16.msra.mxu0 0
    %303 = vmatprep.subr.bf16.mxu0 0
    %304 = vmatpush1.bf16.msra.mxu0 0
    %305 = vmatprep.subr.bf16.mxu0 0
    %306 = vmatpush1.bf16.msra.mxu0 0
    %307 = vmatprep.subr.bf16.mxu0 0
    %308 = vmatpush1.bf16.msra.mxu0 0
    %309 = vmatprep.subr.bf16.mxu0 0
    %310 = vmatpush1.bf16.msra.mxu0 0
    %311 = vmatprep.mubr.bf16.mxu0 0
    %312 = vmatmul.mubr.bf16.gmra.mrb[0].mxu0 %v224
    %v313 = vpop.f32.mrb[0].mxu0
    %v314 = vadd.f32 %v229, %v313
    %v315 = vpop.f32.mrb[0].mxu0
    %v316 = vpop.f32.mrb[0].mxu0
    %v317 = vadd.f32 %v229, %v316
    %v318 = vpop.f32.mrb[0].mxu0
    %319 = vdwg.mxu0
    %v320 = vmax.f32 %v314, 0.0
    %v321 = vmax.f32 %v317, 0.0
    %v322 = vld [vmem:[#allocation7] sm:$0xf]
    %v323 = vld [vmem:[#allocation7 + $0x4] sm:$0xf]
    %v324 = vld [vmem:[#allocation7 + $0x8] sm:$0xf]
    %v325 = vld [vmem:[#allocation7 + $0xc] sm:$0xf]
    %v326 = vld [vmem:[#allocation7 + $0x10] sm:$0xf]
    %v327 = vld [vmem:[#allocation7 + $0x14] sm:$0xf]
    %v328 = vld [vmem:[#allocation7 + $0x18] sm:$0xf]
    %v329 = vld [vmem:[#allocation7 + $0x1c] sm:$0xf]
    %v330 = vld [vmem:[#allocation7 + $0x20] sm:$0xf]
    %v331 = vld [vmem:[#allocation7 + $0x24] sm:$0xf]
    %v332 = vld [vmem:[#allocation7 + $0x28] sm:$0xf]
    %v333 = vld [vmem:[#allocation7 + $0x2c] sm:$0xf]
    %v334 = vld [vmem:[#allocation7 + $0x30] sm:$0xf]
    %v335 = vld [vmem:[#allocation7 + $0x34] sm:$0xf]
    %v336 = vld [vmem:[#allocation7 + $0x38] sm:$0xf]
    %v337 = vld [vmem:[#allocation7 + $0x3c] sm:$0xf]
    %v338 = vld [vmem:[%s6] sm:$0x1]
    %v339 = vpack.c.bf16 %v321, %v320
    %v341 = vlaneseq
    %v342 = vshrl.u32 %v341, 7
    %v343 = vsub.s32 0, %v342
    %v344 = vrot.slane %v338, %v343
    %v362 = vunpack.c.l.b16 %v322
    %v363 = vunpack.c.l.b16 %v323
    %v364 = vunpack.c.l.b16 %v324
    %v365 = vunpack.c.l.b16 %v325
    %v366 = vunpack.c.l.b16 %v326
    %v367 = vunpack.c.l.b16 %v327
    %v368 = vunpack.c.l.b16 %v328
    %v369 = vunpack.c.l.b16 %v329
    %v370 = vunpack.c.l.b16 %v330
    %v371 = vunpack.c.l.b16 %v331
    %v372 = vunpack.c.l.b16 %v332
    %v373 = vunpack.c.l.b16 %v333
    %v374 = vunpack.c.l.b16 %v334
    %v375 = vunpack.c.l.b16 %v335
    %v376 = vunpack.c.l.b16 %v336
    %v377 = vunpack.c.l.b16 %v337
    %v378 = vpack.c.b16 %v363, %v362
    %v379 = vpack.c.b16 %v365, %v364
    %v380 = vpack.c.b16 %v367, %v366
    %v381 = vpack.c.b16 %v369, %v368
    %v382 = vpack.c.b16 %v371, %v370
    %v383 = vpack.c.b16 %v373, %v372
    %v384 = vpack.c.b16 %v375, %v374
    %v385 = vpack.c.b16 %v377, %v376
    %394 = vmatprep.subr.bf16.mxu0 0
    %395 = vmatpush1.bf16.msra.mxu0 %v378
    %396 = vmatprep.subr.bf16.mxu0 0
    %397 = vmatpush1.bf16.msra.mxu0 %v379
    %398 = vmatprep.subr.bf16.mxu0 0
    %399 = vmatpush1.bf16.msra.mxu0 %v380
    %400 = vmatprep.subr.bf16.mxu0 0
    %401 = vmatpush1.bf16.msra.mxu0 %v381
    %402 = vmatprep.subr.bf16.mxu0 0
    %403 = vmatpush1.bf16.msra.mxu0 %v382
    %404 = vmatprep.subr.bf16.mxu0 0
    %405 = vmatpush1.bf16.msra.mxu0 %v383
    %406 = vmatprep.subr.bf16.mxu0 0
    %407 = vmatpush1.bf16.msra.mxu0 %v384
    %408 = vmatprep.subr.bf16.mxu0 0
    %409 = vmatpush1.bf16.msra.mxu0 %v385
    %410 = vmatprep.subr.bf16.mxu0 0
    %411 = vmatpush1.bf16.msra.mxu0 0
    %412 = vmatprep.subr.bf16.mxu0 0
    %413 = vmatpush1.bf16.msra.mxu0 0
    %414 = vmatprep.subr.bf16.mxu0 0
    %415 = vmatpush1.bf16.msra.mxu0 0
    %416 = vmatprep.subr.bf16.mxu0 0
    %417 = vmatpush1.bf16.msra.mxu0 0
    %418 = vmatprep.subr.bf16.mxu0 0
    %419 = vmatpush1.bf16.msra.mxu0 0
    %420 = vmatprep.subr.bf16.mxu0 0
    %421 = vmatpush1.bf16.msra.mxu0 0
    %422 = vmatprep.subr.bf16.mxu0 0
    %423 = vmatpush1.bf16.msra.mxu0 0
    %424 = vmatprep.subr.bf16.mxu0 0
    %425 = vmatpush1.bf16.msra.mxu0 0
    %426 = vmatprep.mubr.bf16.mxu0 0
    %427 = vmatmul.mubr.bf16.gmra.mrb[0].mxu0 %v339
    %v428 = vpop.f32.mrb[0].mxu0
    %v429 = vadd.f32 %v344, %v428
    %v430 = vpop.f32.mrb[0].mxu0
    %v431 = vpop.f32.mrb[0].mxu0
    %v432 = vadd.f32 %v344, %v431
    %v433 = vpop.f32.mrb[0].mxu0
    %434 = vdwg.mxu0
    %v435 = vxor.u32 %v429, 2147483648
    %v436 = vxor.u32 %v432, 2147483648
    %v437 = vmul.f32 %v435, 1.442695
    %v438 = vpow.pop %v437
    %v439 = vmul.f32 %v436, 1.442695
    %v440 = vpow.pop %v439
    %v441 = vadd.f32 %v438, 1.0
    %v442 = vadd.f32 %v440, 1.0
    %v443 = vrcp.pop %v441
    %v444 = vmul.f32 1.0, %v443
    %v445 = vrcp.pop %v442
    %v446 = vmul.f32 1.0, %v445
    %v447 = vlaneseq
    %v448 = vand.u32 %v447, 127
    %vm449 = vcmp.lt.s32.totalorder %v448, 16
    %v450 = vsel %vm449, %v444, 0.0
    %v451 = vsel %vm449, %v446, 0.0
    %452 = vxpose.xlu0.b32.start [1/16] %v450, 128
    %453 = vxpose.xlu0.b32.cont [2/16] %v451, 128
    %454 = vxpose.xlu0.b32.cont [3/16] 0.0, 128
    %455 = vxpose.xlu0.b32.cont [4/16] 0.0, 128
    %456 = vxpose.xlu0.b32.cont [5/16] 0.0, 128
    %457 = vxpose.xlu0.b32.cont [6/16] 0.0, 128
    %458 = vxpose.xlu0.b32.cont [7/16] 0.0, 128
    %459 = vxpose.xlu0.b32.cont [8/16] 0.0, 128
    %460 = vxpose.xlu0.b32.cont [9/16] 0.0, 128
    %461 = vxpose.xlu0.b32.cont [10/16] 0.0, 128
    %462 = vxpose.xlu0.b32.cont [11/16] 0.0, 128
    %463 = vxpose.xlu0.b32.cont [12/16] 0.0, 128
    %464 = vxpose.xlu0.b32.cont [13/16] 0.0, 128
    %465 = vxpose.xlu0.b32.cont [14/16] 0.0, 128
    %466 = vxpose.xlu0.b32.cont [15/16] 0.0, 128
    %467 = vxpose.xlu0.b32.end [16/16] 0.0, 128
    %v468 = vpop.trf.xlu0
    %v469 = vpop.trf.xlu0
    %v470 = vpop.trf.xlu0
    %v471 = vpop.trf.xlu0
    %v472 = vpop.trf.xlu0
    %v473 = vpop.trf.xlu0
    %v474 = vpop.trf.xlu0
    %v475 = vpop.trf.xlu0
    %v476 = vpop.trf.xlu0
    %v477 = vpop.trf.xlu0
    %v478 = vpop.trf.xlu0
    %v479 = vpop.trf.xlu0
    %v480 = vpop.trf.xlu0
    %v481 = vpop.trf.xlu0
    %v482 = vpop.trf.xlu0
    %v483 = vpop.trf.xlu0
    %vm484 = vcmask 130048
    %485 = vst.msk [vmem:[#allocation2] sm:$0xff] %vm484, %v468
    %486 = vst.msk [vmem:[#allocation2 + $0x8] sm:$0xff] %vm484, %v469
    %487 = vst.msk [vmem:[#allocation2 + $0x10] sm:$0xff] %vm484, %v470
    %488 = vst.msk [vmem:[#allocation2 + $0x18] sm:$0xff] %vm484, %v471
    %489 = vst.msk [vmem:[#allocation2 + $0x20] sm:$0xff] %vm484, %v472
    %490 = vst.msk [vmem:[#allocation2 + $0x28] sm:$0xff] %vm484, %v473
    %491 = vst.msk [vmem:[#allocation2 + $0x30] sm:$0xff] %vm484, %v474
    %492 = vst.msk [vmem:[#allocation2 + $0x38] sm:$0xff] %vm484, %v475
    %493 = vst.msk [vmem:[#allocation2 + $0x40] sm:$0xff] %vm484, %v476
    %494 = vst.msk [vmem:[#allocation2 + $0x48] sm:$0xff] %vm484, %v477
    %495 = vst.msk [vmem:[#allocation2 + $0x50] sm:$0xff] %vm484, %v478
    %496 = vst.msk [vmem:[#allocation2 + $0x58] sm:$0xff] %vm484, %v479
    %497 = vst.msk [vmem:[#allocation2 + $0x60] sm:$0xff] %vm484, %v480
    %498 = vst.msk [vmem:[#allocation2 + $0x68] sm:$0xff] %vm484, %v481
    %499 = vst.msk [vmem:[#allocation2 + $0x70] sm:$0xff] %vm484, %v482
    %500 = vst.msk [vmem:[#allocation2 + $0x78] sm:$0xff] %vm484, %v483
    %v501 = vld [vmem:[#allocation2] sm:$0xff]
    %v502 = vld [vmem:[#allocation8] sm:$0xff]
    %v503 = vlaneseq
    %v504 = vshrl.u32 %v503, 7
    %v505 = vsub.s32 0, %v504
    %v506 = vrot.slane %v501, %v505
    %508 = vbcast.lane.b32.xlu0 %v506, 256
    %v509 = vpop.permute.xlu0 %508
    %s511 = sor.u32 256, 8
    %512 = vbcast.lane.b32.xlu0 %v506, %s511
    %v513 = vpop.permute.xlu0 %512
    %v514 = vlaneseq
    %v515 = vshrl.u32 %v514, 7
    %v516 = vsub.s32 1, %v515
    %v517 = vrot.slane %v501, %v516
    %519 = vbcast.lane.b32.xlu0 %v517, 256
    %v520 = vpop.permute.xlu0 %519
    %s522 = sor.u32 256, 8
    %523 = vbcast.lane.b32.xlu0 %v517, %s522
    %v524 = vpop.permute.xlu0 %523
    %v525 = vlaneseq
    %v526 = vshrl.u32 %v525, 7
    %v527 = vsub.s32 2, %v526
    %v528 = vrot.slane %v501, %v527
    %530 = vbcast.lane.b32.xlu0 %v528, 256
    %v531 = vpop.permute.xlu0 %530
    %s533 = sor.u32 256, 8
    %534 = vbcast.lane.b32.xlu0 %v528, %s533
    %v535 = vpop.permute.xlu0 %534
    %v536 = vlaneseq
    %v537 = vshrl.u32 %v536, 7
    %v538 = vsub.s32 3, %v537
    %v539 = vrot.slane %v501, %v538
    %541 = vbcast.lane.b32.xlu0 %v539, 256
    %v542 = vpop.permute.xlu0 %541
    %s544 = sor.u32 256, 8
    %545 = vbcast.lane.b32.xlu0 %v539, %s544
    %v546 = vpop.permute.xlu0 %545
    %v547 = vlaneseq
    %v548 = vshrl.u32 %v547, 7
    %v549 = vsub.s32 4, %v548
    %v550 = vrot.slane %v501, %v549
    %552 = vbcast.lane.b32.xlu0 %v550, 256
    %v553 = vpop.permute.xlu0 %552
    %s555 = sor.u32 256, 8
    %556 = vbcast.lane.b32.xlu0 %v550, %s555
    %v557 = vpop.permute.xlu0 %556
    %v558 = vlaneseq
    %v559 = vshrl.u32 %v558, 7
    %v560 = vsub.s32 5, %v559
    %v561 = vrot.slane %v501, %v560
    %563 = vbcast.lane.b32.xlu0 %v561, 256
    %v564 = vpop.permute.xlu0 %563
    %s566 = sor.u32 256, 8
    %567 = vbcast.lane.b32.xlu0 %v561, %s566
    %v568 = vpop.permute.xlu0 %567
    %v569 = vlaneseq
    %v570 = vshrl.u32 %v569, 7
    %v571 = vsub.s32 6, %v570
    %v572 = vrot.slane %v501, %v571
    %574 = vbcast.lane.b32.xlu0 %v572, 256
    %v575 = vpop.permute.xlu0 %574
    %s577 = sor.u32 256, 8
    %578 = vbcast.lane.b32.xlu0 %v572, %s577
    %v579 = vpop.permute.xlu0 %578
    %v580 = vlaneseq
    %v581 = vshrl.u32 %v580, 7
    %v582 = vsub.s32 7, %v581
    %v583 = vrot.slane %v501, %v582
    %585 = vbcast.lane.b32.xlu0 %v583, 256
    %v586 = vpop.permute.xlu0 %585
    %s588 = sor.u32 256, 8
    %589 = vbcast.lane.b32.xlu0 %v583, %s588
    %v590 = vpop.permute.xlu0 %589
    %v592 = vcombine.high %v502, %v502
    %v594 = vunpack.c.l.s4 1966171168
    %v595 = vunpack.c.0.s8 %v594
    %v596 = vlaneseq
    %v597 = vshrl.u32 %v596, 7
    %v598 = vsub.s32 %v595, %v597
    %v599 = vrot.slane %v502, %v598
    %v601 = vunpack.c.l.s4 1966171168
    %v602 = vunpack.c.0.s8 %v601
    %v603 = vlaneseq
    %v604 = vshrl.u32 %v603, 7
    %v605 = vsub.s32 %v602, %v604
    %v606 = vrot.slane %v592, %v605
    %v607 = vcombine.high %v599, %v599
    %v608 = vcombine.high %v606, %v606
    %v610 = vunpack.c.l.s4 1966171168
    %v611 = vunpack.c.0.s8 %v610
    %v612 = vlaneseq
    %v613 = vshrl.u32 %v612, 7
    %v614 = vsub.s32 %v611, %v613
    %v615 = vrot.slane %v599, %v614
    %v617 = vunpack.c.l.s4 1966171168
    %v618 = vunpack.c.0.s8 %v617
    %v619 = vlaneseq
    %v620 = vshrl.u32 %v619, 7
    %v621 = vsub.s32 %v618, %v620
    %v622 = vrot.slane %v606, %v621
    %v624 = vunpack.c.l.s4 1966171168
    %v625 = vunpack.c.0.s8 %v624
    %v626 = vlaneseq
    %v627 = vshrl.u32 %v626, 7
    %v628 = vsub.s32 %v625, %v627
    %v629 = vrot.slane %v607, %v628
    %v631 = vunpack.c.l.s4 1966171168
    %v632 = vunpack.c.0.s8 %v631
    %v633 = vlaneseq
    %v634 = vshrl.u32 %v633, 7
    %v635 = vsub.s32 %v632, %v634
    %v636 = vrot.slane %v608, %v635
    %v637 = vcombine.high %v615, %v615
    %v638 = vcombine.high %v622, %v622
    %v639 = vcombine.high %v629, %v629
    %v640 = vcombine.high %v636, %v636
    %v641 = vlaneseq
    %v642 = vshrl.u32 %v641, 7
    %v643 = vsub.s32 0, %v642
    %v644 = vrot.slane %v615, %v643
    %v645 = vlaneseq
    %v646 = vshrl.u32 %v645, 7
    %v647 = vsub.s32 0, %v646
    %v648 = vrot.slane %v629, %v647
    %v649 = vlaneseq
    %v650 = vshrl.u32 %v649, 7
    %v651 = vsub.s32 0, %v650
    %v652 = vrot.slane %v637, %v651
    %v653 = vlaneseq
    %v654 = vshrl.u32 %v653, 7
    %v655 = vsub.s32 0, %v654
    %v656 = vrot.slane %v639, %v655
    %v657 = vlaneseq
    %v658 = vshrl.u32 %v657, 7
    %v659 = vsub.s32 0, %v658
    %v660 = vrot.slane %v622, %v659
    %v661 = vlaneseq
    %v662 = vshrl.u32 %v661, 7
    %v663 = vsub.s32 0, %v662
    %v664 = vrot.slane %v636, %v663
    %v665 = vlaneseq
    %v666 = vshrl.u32 %v665, 7
    %v667 = vsub.s32 0, %v666
    %v668 = vrot.slane %v638, %v667
    %v669 = vlaneseq
    %v670 = vshrl.u32 %v669, 7
    %v671 = vsub.s32 0, %v670
    %v672 = vrot.slane %v640, %v671
    %v681 = vadd.f32 %v509, %v644
    %v682 = vadd.f32 %v513, %v644
    %v683 = vadd.f32 %v520, %v648
    %v684 = vadd.f32 %v524, %v648
    %v685 = vadd.f32 %v531, %v652
    %v686 = vadd.f32 %v535, %v652
    %v687 = vadd.f32 %v542, %v656
    %v688 = vadd.f32 %v546, %v656
    %v689 = vadd.f32 %v553, %v660
    %v690 = vadd.f32 %v557, %v660
    %v691 = vadd.f32 %v564, %v664
    %v692 = vadd.f32 %v568, %v664
    %v693 = vadd.f32 %v575, %v668
    %v694 = vadd.f32 %v579, %v668
    %v695 = vadd.f32 %v586, %v672
    %v696 = vadd.f32 %v590, %v672
    %v697 = vmax.f32 %v681, %v685
    %v698 = vmax.f32 %v683, %v687
    %v699 = vmax.f32 %v697, %v689
    %v700 = vmax.f32 %v698, %v691
    %v701 = vmax.f32 %v699, %v693
    %v702 = vmax.f32 %v700, %v695
    %v703 = vmax.f32 %v701, %v702
    %v704 = vmax.f32 %v682, %v686
    %v705 = vmax.f32 %v684, %v688
    %v706 = vmax.f32 %v704, %v690
    %v707 = vmax.f32 %v705, %v692
    %v708 = vmax.f32 %v706, %v694
    %v709 = vmax.f32 %v707, %v696
    %v710 = vmax.f32 %v708, %v709
    %v711 = vmax.f32 %v703, 0.0
    %v712 = vmax.f32 %v710, 0.0
    %v713 = vld [vmem:[#allocation2 + $0x8] sm:$0xff]
    %v714 = vld [vmem:[#allocation8 + $0x8] sm:$0xff]
    %v715 = vlaneseq
    %v716 = vshrl.u32 %v715, 7
    %v717 = vsub.s32 0, %v716
    %v718 = vrot.slane %v713, %v717
    %720 = vbcast.lane.b32.xlu0 %v718, 256
    %v721 = vpop.permute.xlu0 %720
    %s723 = sor.u32 256, 8
    %724 = vbcast.lane.b32.xlu0 %v718, %s723
    %v725 = vpop.permute.xlu0 %724
    %v726 = vlaneseq
    %v727 = vshrl.u32 %v726, 7
    %v728 = vsub.s32 1, %v727
    %v729 = vrot.slane %v713, %v728
    %731 = vbcast.lane.b32.xlu0 %v729, 256
    %v732 = vpop.permute.xlu0 %731
    %s734 = sor.u32 256, 8
    %735 = vbcast.lane.b32.xlu0 %v729, %s734
    %v736 = vpop.permute.xlu0 %735
    %v737 = vlaneseq
    %v738 = vshrl.u32 %v737, 7
    %v739 = vsub.s32 2, %v738
    %v740 = vrot.slane %v713, %v739
    %742 = vbcast.lane.b32.xlu0 %v740, 256
    %v743 = vpop.permute.xlu0 %742
    %s745 = sor.u32 256, 8
    %746 = vbcast.lane.b32.xlu0 %v740, %s745
    %v747 = vpop.permute.xlu0 %746
    %v748 = vlaneseq
    %v749 = vshrl.u32 %v748, 7
    %v750 = vsub.s32 3, %v749
    %v751 = vrot.slane %v713, %v750
    %753 = vbcast.lane.b32.xlu0 %v751, 256
    %v754 = vpop.permute.xlu0 %753
    %s756 = sor.u32 256, 8
    %757 = vbcast.lane.b32.xlu0 %v751, %s756
    %v758 = vpop.permute.xlu0 %757
    %v759 = vlaneseq
    %v760 = vshrl.u32 %v759, 7
    %v761 = vsub.s32 4, %v760
    %v762 = vrot.slane %v713, %v761
    %764 = vbcast.lane.b32.xlu0 %v762, 256
    %v765 = vpop.permute.xlu0 %764
    %s767 = sor.u32 256, 8
    %768 = vbcast.lane.b32.xlu0 %v762, %s767
    %v769 = vpop.permute.xlu0 %768
    %v770 = vlaneseq
    %v771 = vshrl.u32 %v770, 7
    %v772 = vsub.s32 5, %v771
    %v773 = vrot.slane %v713, %v772
    %775 = vbcast.lane.b32.xlu0 %v773, 256
    %v776 = vpop.permute.xlu0 %775
    %s778 = sor.u32 256, 8
    %779 = vbcast.lane.b32.xlu0 %v773, %s778
    %v780 = vpop.permute.xlu0 %779
    %v781 = vlaneseq
    %v782 = vshrl.u32 %v781, 7
    %v783 = vsub.s32 6, %v782
    %v784 = vrot.slane %v713, %v783
    %786 = vbcast.lane.b32.xlu0 %v784, 256
    %v787 = vpop.permute.xlu0 %786
    %s789 = sor.u32 256, 8
    %790 = vbcast.lane.b32.xlu0 %v784, %s789
    %v791 = vpop.permute.xlu0 %790
    %v792 = vlaneseq
    %v793 = vshrl.u32 %v792, 7
    %v794 = vsub.s32 7, %v793
    %v795 = vrot.slane %v713, %v794
    %797 = vbcast.lane.b32.xlu0 %v795, 256
    %v798 = vpop.permute.xlu0 %797
    %s800 = sor.u32 256, 8
    %801 = vbcast.lane.b32.xlu0 %v795, %s800
    %v802 = vpop.permute.xlu0 %801
    %v804 = vcombine.high %v714, %v714
    %v806 = vunpack.c.l.s4 1966171168
    %v807 = vunpack.c.0.s8 %v806
    %v808 = vlaneseq
    %v809 = vshrl.u32 %v808, 7
    %v810 = vsub.s32 %v807, %v809
    %v811 = vrot.slane %v714, %v810
    %v813 = vunpack.c.l.s4 1966171168
    %v814 = vunpack.c.0.s8 %v813
    %v815 = vlaneseq
    %v816 = vshrl.u32 %v815, 7
    %v817 = vsub.s32 %v814, %v816
    %v818 = vrot.slane %v804, %v817
    %v819 = vcombine.high %v811, %v811
    %v820 = vcombine.high %v818, %v818
    %v822 = vunpack.c.l.s4 1966171168
    %v823 = vunpack.c.0.s8 %v822
    %v824 = vlaneseq
    %v825 = vshrl.u32 %v824, 7
    %v826 = vsub.s32 %v823, %v825
    %v827 = vrot.slane %v811, %v826
    %v829 = vunpack.c.l.s4 1966171168
    %v830 = vunpack.c.0.s8 %v829
    %v831 = vlaneseq
    %v832 = vshrl.u32 %v831, 7
    %v833 = vsub.s32 %v830, %v832
    %v834 = vrot.slane %v818, %v833
    %v836 = vunpack.c.l.s4 1966171168
    %v837 = vunpack.c.0.s8 %v836
    %v838 = vlaneseq
    %v839 = vshrl.u32 %v838, 7
    %v840 = vsub.s32 %v837, %v839
    %v841 = vrot.slane %v819, %v840
    %v843 = vunpack.c.l.s4 1966171168
    %v844 = vunpack.c.0.s8 %v843
    %v845 = vlaneseq
    %v846 = vshrl.u32 %v845, 7
    %v847 = vsub.s32 %v844, %v846
    %v848 = vrot.slane %v820, %v847
    %v849 = vcombine.high %v827, %v827
    %v850 = vcombine.high %v834, %v834
    %v851 = vcombine.high %v841, %v841
    %v852 = vcombine.high %v848, %v848
    %v853 = vlaneseq
    %v854 = vshrl.u32 %v853, 7
    %v855 = vsub.s32 0, %v854
    %v856 = vrot.slane %v827, %v855
    %v857 = vlaneseq
    %v858 = vshrl.u32 %v857, 7
    %v859 = vsub.s32 0, %v858
    %v860 = vrot.slane %v841, %v859
    %v861 = vlaneseq
    %v862 = vshrl.u32 %v861, 7
    %v863 = vsub.s32 0, %v862
    %v864 = vrot.slane %v849, %v863
    %v865 = vlaneseq
    %v866 = vshrl.u32 %v865, 7
    %v867 = vsub.s32 0, %v866
    %v868 = vrot.slane %v851, %v867
    %v869 = vlaneseq
    %v870 = vshrl.u32 %v869, 7
    %v871 = vsub.s32 0, %v870
    %v872 = vrot.slane %v834, %v871
    %v873 = vlaneseq
    %v874 = vshrl.u32 %v873, 7
    %v875 = vsub.s32 0, %v874
    %v876 = vrot.slane %v848, %v875
    %v877 = vlaneseq
    %v878 = vshrl.u32 %v877, 7
    %v879 = vsub.s32 0, %v878
    %v880 = vrot.slane %v850, %v879
    %v881 = vlaneseq
    %v882 = vshrl.u32 %v881, 7
    %v883 = vsub.s32 0, %v882
    %v884 = vrot.slane %v852, %v883
    %v893 = vadd.f32 %v721, %v856
    %v894 = vadd.f32 %v725, %v856
    %v895 = vadd.f32 %v732, %v860
    %v896 = vadd.f32 %v736, %v860
    %v897 = vadd.f32 %v743, %v864
    %v898 = vadd.f32 %v747, %v864
    %v899 = vadd.f32 %v754, %v868
    %v900 = vadd.f32 %v758, %v868
    %v901 = vadd.f32 %v765, %v872
    %v902 = vadd.f32 %v769, %v872
    %v903 = vadd.f32 %v776, %v876
    %v904 = vadd.f32 %v780, %v876
    %v905 = vadd.f32 %v787, %v880
    %v906 = vadd.f32 %v791, %v880
    %v907 = vadd.f32 %v798, %v884
    %v908 = vadd.f32 %v802, %v884
    %v909 = vmax.f32 %v893, %v897
    %v910 = vmax.f32 %v895, %v899
    %v911 = vmax.f32 %v909, %v901
    %v912 = vmax.f32 %v910, %v903
    %v913 = vmax.f32 %v911, %v905
    %v914 = vmax.f32 %v912, %v907
    %v915 = vmax.f32 %v913, %v914
    %v916 = vmax.f32 %v894, %v898
    %v917 = vmax.f32 %v896, %v900
    %v918 = vmax.f32 %v916, %v902
    %v919 = vmax.f32 %v917, %v904
    %v920 = vmax.f32 %v918, %v906
    %v921 = vmax.f32 %v919, %v908
    %v922 = vmax.f32 %v920, %v921
    %v923 = vmax.f32 %v711, %v915
    %v924 = vmax.f32 %v712, %v922
    %v925 = vsub.f32 %v923, 1.0
    %v926 = vsub.f32 %v924, 1.0
    %v927 = vmax.f32 %v925, 0.0
    %v928 = vmax.f32 %v926, 0.0
    %929 = vst [vmem:[%s8] sm:$0xff] %v927
    %930 = vst [vmem:[%s8 + $0x8] sm:$0xff] %v928
    // Predicated region
    $region50: #{chmcnn_forward_padded.1} parent=1 // pred_check
      _
    $region51: #{chmcnn_forward_padded.1} parent=1 // pred_check_branch
      %932 = sbr.rel (0) target = $region53
    $region52: #{chmcnn_forward_padded.1} parent=1 // pred_region
      _
    $region53: #{chmcnn_forward_padded.1} parent=1 // pred_fallthru
      _
    // Predicated region
    $region54: #{chmcnn_forward_padded.1} parent=1 // pred_check
      _
    $region55: #{chmcnn_forward_padded.1} parent=1 // pred_check_branch
      %934 = sbr.rel (0) target = $region57
    $region56: #{chmcnn_forward_padded.1} parent=1 // pred_region
      _
    $region57: #{chmcnn_forward_padded.1} parent=1 // pred_fallthru
      _
    %935 = vsyncpa [#allocation4], 1
    %936 = vsyncpa [#allocation6], 1
    %937 = vsyncpa [#allocation9], 1

</llo_original>
